<compile_context>
chip_gen: v5e
topology: v5e:2x2
jax: 0.10.0
libtpu: 0.0.40
codegen_flags: <defaults>
</compile_context>

<pallas_src>
import functools
import numpy as np
import jax
import jax.numpy as jnp
from jax.experimental import pallas as pl
from jax.experimental.pallas import tpu as pltpu


def _ru(x, m):
    return (x + m - 1) // m * m


def _fit_tile(dim, cap, step):
    """Largest tile <= cap (multiple of `step`) dividing `dim`; `dim` itself if small; None if none."""
    if dim <= cap:
        return dim
    t = cap - cap % step
    while t >= step:
        if dim % t == 0:
            return t
        t -= step
    return None


_VMEM_LIMIT = 32 * 1024 * 1024   # >= default scoped VMEM on v5e/v6e/v7x; tiles stay well below.


# -----------------------------------------------------------------------------
# Pallas kernels
# -----------------------------------------------------------------------------
def _mm_kernel(a_ref, b_ref, bias_ref, *rest, relu, has_res):
    """Tiled matmul: out = act(A @ B + bias [+ residual]).

    A/B are bf16 MXU operands; accumulation and the epilogue stay in f32.
    rest = ([res_ref,] o_ref, acc_ref).  Residual may be bf16 (upcast here).
    """
    if has_res:
        res_ref, o_ref, acc_ref = rest
    else:
        res_ref = None
        o_ref, acc_ref = rest

    @pl.when(pl.program_id(2) == 0)
    def _():
        acc_ref[...] = jnp.zeros_like(acc_ref)

    acc_ref[...] += jnp.dot(a_ref[...], b_ref[...],
                            preferred_element_type=jnp.float32)

    @pl.when(pl.program_id(2) == pl.num_programs(2) - 1)
    def _():
        r = acc_ref[...] + bias_ref[...]
        if has_res:
            r = r + res_ref[...].astype(jnp.float32)
        if relu:
            r = jnp.maximum(r, 0.0)
        o_ref[...] = r.astype(o_ref.dtype)


def _conv_kernel(*refs, k, stride, OH, OW, relu):
    """Direct kxk conv for one image / one Cout tile.

    refs = (plane_refs... , w_ref(k*k, C, tn), bias_ref(1, tn), o_ref(1, OH, OW, tn)).
    For stride s there are s*s parity planes; tap (ki,kj) reads plane (ki%s, kj%s) at a
    unit-stride shifted window, so no strided/scatter access happens in-kernel.  The 9 (or
    k*k) tap matmuls accumulate into one f32 value; bias + ReLU fused in the epilogue.
    """
    nplanes = stride * stride
    planes = refs[:nplanes]
    w_ref, b_ref, o_ref = refs[nplanes], refs[nplanes + 1], refs[nplanes + 2]
    C = w_ref.shape[1]
    tn = w_ref.shape[2]

    acc = jnp.zeros((OH * OW, tn), jnp.float32)
    for ki in range(k):
        for kj in range(k):
            p = planes[(ki % stride) * stride + (kj % stride)]
            ri, rj = ki // stride, kj // stride
            patch = p[0, ri:ri + OH, rj:rj + OW, :].reshape(OH * OW, C)
            acc = acc + jnp.dot(patch, w_ref[ki * k + kj, :, :],
                                preferred_element_type=jnp.float32)
    r = acc + b_ref[...]
    if relu:
        r = jnp.maximum(r, 0.0)
    o_ref[0] = r.reshape(OH, OW, tn).astype(o_ref.dtype)


def _maxpool3x3s2_kernel(ee_ref, eo_ref, oe_ref, oo_ref, o_ref, *, OH, OW):
    """3x3 stride-2 max pool from the four (row,col) parity planes of the padded image."""
    m = ee_ref[0, 0:OH, 0:OW, :]
    m = jnp.maximum(m, eo_ref[0, 0:OH, 0:OW, :])
    m = jnp.maximum(m, ee_ref[0, 0:OH, 1:OW + 1, :])
    m = jnp.maximum(m, oe_ref[0, 0:OH, 0:OW, :])
    m = jnp.maximum(m, oo_ref[0, 0:OH, 0:OW, :])
    m = jnp.maximum(m, oe_ref[0, 0:OH, 1:OW + 1, :])
    m = jnp.maximum(m, ee_ref[0, 1:OH + 1, 0:OW, :])
    m = jnp.maximum(m, eo_ref[0, 1:OH + 1, 0:OW, :])
    m = jnp.maximum(m, ee_ref[0, 1:OH + 1, 1:OW + 1, :])
    o_ref[0] = m


# -----------------------------------------------------------------------------
# Pallas wrappers
# -----------------------------------------------------------------------------
def matmul_bias_act(a, w, b, relu, residual=None, out_dtype=jnp.float32):
    """out = act(a @ w + b [+ residual]).  a:(M,K)  w:(K,N)  b:(N,)  residual:(M,N)."""
    M, K = a.shape
    K2, N = w.shape
    assert K == K2

    # Tiles that divide exactly whenever possible -> no jnp.pad copy of the activation.
    tm = _fit_tile(M, 512, 8)
    tk = _fit_tile(K, 512, 8)
    tn = _fit_tile(N, 512, 128)
    Mp = M if tm is not None else _ru(M, 128)
    Kp = K if tk is not None else _ru(K, 128)
    Np = N if tn is not None else _ru(N, 128)
    tm = tm if tm is not None else 128
    tk = tk if tk is not None else 128
    tn = tn if tn is not None else 128

    # Keep >=2 blocks on a parallel axis when possible (v7x has 2 TensorCores).
    if Mp // tm == 1 and Np // tn == 1 and tn % 256 == 0:
        tn //= 2

    a_p = a.astype(jnp.bfloat16)                     # no-op for bf16 activations
    if (Mp, Kp) != (M, K):
        a_p = jnp.pad(a_p, ((0, Mp - M), (0, Kp - K)))
    w_p = w.astype(jnp.bfloat16)
    if (Kp, Np) != (K, N):
        w_p = jnp.pad(w_p, ((0, Kp - K), (0, Np - N)))
    b_p = b.reshape(1, N).astype(jnp.float32)
    if Np != N:
        b_p = jnp.pad(b_p, ((0, 0), (0, Np - N)))

    in_specs = [
        pl.BlockSpec((tm, tk), lambda i, j, k: (i, k)),
        pl.BlockSpec((tk, tn), lambda i, j, k: (k, j)),
        pl.BlockSpec((1, tn), lambda i, j, k: (0, j)),
    ]
    inputs = [a_p, w_p, b_p]
    bytes_acc = (Mp * Kp + Kp * Np) * 2 + Np * 4 + Mp * Np * np.dtype(out_dtype).itemsize
    if residual is not None:
        r_p = residual                               # keep incoming dtype (bf16 in the net)
        if (Mp, Np) != (M, N):
            r_p = jnp.pad(r_p, ((0, Mp - M), (0, Np - N)))
        in_specs.append(pl.BlockSpec((tm, tn), lambda i, j, k: (i, j)))
        inputs.append(r_p)
        bytes_acc += Mp * Np * r_p.dtype.itemsize

    kernel = functools.partial(_mm_kernel, relu=relu, has_res=residual is not None)
    out = pl.pallas_call(
        kernel,
        out_shape=jax.ShapeDtypeStruct((Mp, Np), out_dtype),
        grid_spec=pltpu.PrefetchScalarGridSpec(
            num_scalar_prefetch=0,
            grid=(Mp // tm, Np // tn, Kp // tk),
            in_specs=in_specs,
            out_specs=pl.BlockSpec((tm, tn), lambda i, j, k: (i, j)),
            scratch_shapes=[pltpu.VMEM((tm, tn), jnp.float32)],
        ),
        compiler_params=pltpu.CompilerParams(
            dimension_semantics=("parallel", "parallel", "arbitrary"),
            vmem_limit_bytes=_VMEM_LIMIT),
        cost_estimate=pl.CostEstimate(flops=2 * M * N * K, transcendentals=0,
                                      bytes_accessed=int(bytes_acc)),
    )(*inputs)
    if (Mp, Np) != (M, N):
        out = out[:M, :N]
    return out


def conv_direct(x_flat, N, H, W, w4, b, k, stride, pad, relu, out_dtype=jnp.bfloat16):
    """Direct kxk conv (no im2col in HBM), taps folded into the in-kernel reduction."""
    C = x_flat.shape[1]
    Cout = w4.shape[3]
    OH = (H + 2 * pad - k) // stride + 1
    OW = (W + 2 * pad - k) // stride + 1

    xim = x_flat.reshape(N, H, W, C)
    xp = jnp.pad(xim, ((0, 0), (pad, pad), (pad, pad), (0, 0)))
    if stride == 1:
        planes = [xp]
    else:
        planes = [xp[:, a::stride, bb::stride, :]
                  for a in range(stride) for bb in range(stride)]

    tn = Cout if Cout <= 256 else 256
    assert Cout % tn == 0
    grid = (N, Cout // tn)

    in_specs = [pl.BlockSpec((1,) + p.shape[1:], lambda n, j: (n, 0, 0, 0))
                for p in planes]
    in_specs.append(pl.BlockSpec((k * k, C, tn), lambda n, j: (0, 0, j)))
    in_specs.append(pl.BlockSpec((1, tn), lambda n, j: (0, j)))

    w_p = w4.reshape(k * k, C, Cout).astype(jnp.bfloat16)
    b_p = b.reshape(1, Cout).astype(jnp.float32)

    bytes_acc = (sum(int(np.prod(p.shape)) for p in planes) * 2
                 + k * k * C * Cout * 2 + Cout * 4
                 + N * OH * OW * Cout * np.dtype(out_dtype).itemsize)

    out = pl.pallas_call(
        functools.partial(_conv_kernel, k=k, stride=stride, OH=OH, OW=OW, relu=relu),
        out_shape=jax.ShapeDtypeStruct((N, OH, OW, Cout), out_dtype),
        grid_spec=pltpu.PrefetchScalarGridSpec(
            num_scalar_prefetch=0,
            grid=grid,
            in_specs=in_specs,
            out_specs=pl.BlockSpec((1, OH, OW, tn), lambda n, j: (n, 0, 0, j)),
        ),
        compiler_params=pltpu.CompilerParams(
            dimension_semantics=("parallel", "parallel"),
            vmem_limit_bytes=_VMEM_LIMIT),
        cost_estimate=pl.CostEstimate(flops=2 * N * OH * OW * k * k * C * Cout,
                                      transcendentals=0, bytes_accessed=int(bytes_acc)),
    )(*planes, w_p, b_p)
    return out.reshape(N * OH * OW, Cout), OH, OW


def maxpool3x3s2(x_flat, N, H, W):
    C = x_flat.shape[1]
    dt = x_flat.dtype                                  # bf16 in the network (exact for max)
    xim = x_flat.reshape(N, H, W, C)
    xp = jnp.pad(xim, ((0, 0), (1, 1), (1, 1), (0, 0)),
                 constant_values=float("-inf"))
    OH = (H + 2 - 3) // 2 + 1
    OW = (W + 2 - 3) // 2 + 1
    planes = [xp[:, 0::2, 0::2, :], xp[:, 0::2, 1::2, :],
              xp[:, 1::2, 0::2, :], xp[:, 1::2, 1::2, :]]
    in_specs = [pl.BlockSpec((1,) + p.shape[1:], lambda n: (n, 0, 0, 0))
                for p in planes]
    bytes_acc = (sum(int(np.prod(p.shape)) for p in planes)
                 + N * OH * OW * C) * np.dtype(dt).itemsize
    out = pl.pallas_call(
        functools.partial(_maxpool3x3s2_kernel, OH=OH, OW=OW),
        out_shape=jax.ShapeDtypeStruct((N, OH, OW, C), dt),
        grid_spec=pltpu.PrefetchScalarGridSpec(
            num_scalar_prefetch=0,
            grid=(N,),
            in_specs=in_specs,
            out_specs=pl.BlockSpec((1, OH, OW, C), lambda n: (n, 0, 0, 0)),
        ),
        compiler_params=pltpu.CompilerParams(dimension_semantics=("parallel",),
                                             vmem_limit_bytes=_VMEM_LIMIT),
        cost_estimate=pl.CostEstimate(flops=9 * N * OH * OW * C, transcendentals=0,
                                      bytes_accessed=int(bytes_acc)),
    )(*planes)
    return out.reshape(N * OH * OW, C), OH, OW


# -----------------------------------------------------------------------------
# Conv glue (direct kernel for 3x3, pure matmul for 1x1, im2col only for the stem)
# -----------------------------------------------------------------------------
def _im2col(x, k, stride, pad):
    """x: [N,H,W,C] -> patches [N*OH*OW, k*k*C] (tap order (ki,kj), channel last)."""
    N, H, W, C = x.shape
    xp = jnp.pad(x, ((0, 0), (pad, pad), (pad, pad), (0, 0)))
    OH = (H + 2 * pad - k) // stride + 1
    OW = (W + 2 * pad - k) // stride + 1
    cols = []
    for i in range(k):
        for j in range(k):
            cols.append(xp[:, i:i + (OH - 1) * stride + 1:stride,
                           j:j + (OW - 1) * stride + 1:stride, :])
    patches = jnp.stack(cols, axis=3)                 # [N,OH,OW,k*k,C]
    return patches.reshape(N * OH * OW, k * k * C), OH, OW


def conv_bn(x_flat, N, H, W, wb, k, stride, pad, relu, residual=None,
            out_dtype=jnp.bfloat16):
    """Conv(kxk, stride, pad, bias=False) + folded eval-BN (+ fused residual) (+ ReLU)."""
    w4, b = wb                                        # w4: (kh,kw,cin,cout) bf16
    C = x_flat.shape[1]
    Cout = w4.shape[3]
    if k == 1 and pad == 0:
        if stride == 1:
            patches, OH, OW = x_flat, H, W            # 1x1/s1: no gather at all
        else:
            OH = (H - 1) // stride + 1
            OW = (W - 1) // stride + 1
            patches = (x_flat.reshape(N, H, W, C)[:, ::stride, ::stride, :]
                       .reshape(N * OH * OW, C))
        out = matmul_bias_act(patches, w4.reshape(C, Cout), b, relu=relu,
                              residual=residual, out_dtype=out_dtype)
        return out, OH, OW
    if k == 3:
        assert residual is None
        return conv_direct(x_flat, N, H, W, w4, b, k, stride, pad, relu, out_dtype)
    # k == 7 stem (C=3): bf16 im2col glue.  TODO(synk): space-to-depth stem path.
    patches, OH, OW = _im2col(x_flat.reshape(N, H, W, C), k, stride, pad)
    out = matmul_bias_act(patches, w4.reshape(k * k * C, Cout), b, relu=relu,
                          residual=residual, out_dtype=out_dtype)
    return out, OH, OW


# -----------------------------------------------------------------------------
# ResNet-50 + replaced fc head
# -----------------------------------------------------------------------------
LAYER_CFG = [(64, 3, 1), (128, 4, 2), (256, 6, 2), (512, 3, 2)]  # (planes, blocks, stride)
_BN_EPS = 1e-5


def conv_bn_params(key, cin, cout, k):
    """Deterministic conv weight + eval-mode BN, folded into (W4 bf16, bias f32)."""
    k1, k2, k3, k4, k5 = jax.random.split(key, 5)
    w = jax.random.normal(k1, (cout, cin, k, k), jnp.float32) * np.sqrt(2.0 / (cin * k * k))
    gamma = 1.0 + 0.1 * jax.random.normal(k2, (cout,), jnp.float32)
    beta = 0.1 * jax.random.normal(k3, (cout,), jnp.float32)
    mean = 0.1 * jax.random.normal(k4, (cout,), jnp.float32)
    var = 1.0 + 0.1 * jax.random.uniform(k5, (cout,), jnp.float32)
    scale = gamma / jnp.sqrt(var + _BN_EPS)
    w_f = w * scale[:, None, None, None]
    b_f = beta - mean * scale
    # (cout,cin,kh,kw) -> (kh,kw,cin,cout); stored bf16 (MXU operand dtype).
    w4 = jnp.transpose(w_f, (2, 3, 1, 0)).astype(jnp.bfloat16)
    return w4, b_f


def linear_params(key, fan_in, fan_out):
    kw, kb = jax.random.split(key)
    w = jax.random.normal(kw, (fan_in, fan_out), jnp.float32) / np.sqrt(fan_in)
    b = 0.01 * jax.random.normal(kb, (fan_out,), jnp.float32)
    return w, b


def init_params(key, out_features):
    k_stem, k1, k2, k3, k4, kfc = jax.random.split(key, 6)
    params = {"stem": conv_bn_params(k_stem, 3, 64, 7)}
    layers = []
    cin = 64
    for kk, (planes, nblocks, _stride0) in zip([k1, k2, k3, k4], LAYER_CFG):
        bkeys = jax.random.split(kk, nblocks)
        blocks = []
        for bi in range(nblocks):
            ks = jax.random.split(bkeys[bi], 4)
            in_ch = cin if bi == 0 else planes * 4
            blocks.append({
                "conv1": conv_bn_params(ks[0], in_ch, planes, 1),
                "conv2": conv_bn_params(ks[1], planes, planes, 3),
                "conv3": conv_bn_params(ks[2], planes, planes * 4, 1),
                "downsample": conv_bn_params(ks[3], in_ch, planes * 4, 1) if bi == 0 else None,
            })
        layers.append(blocks)
        cin = planes * 4
    params["layers"] = layers
    # resnet50.fc replaced by Linear(2048, out_features)
    params["fc"] = linear_params(kfc, 2048, out_features)
    return params


def _bottleneck(x, N, H, W, blk, stride):
    out, H1, W1 = conv_bn(x, N, H, W, blk["conv1"], 1, 1, 0, relu=True)
    out, H2, W2 = conv_bn(out, N, H1, W1, blk["conv2"], 3, stride, 1, relu=True)
    if blk["downsample"] is not None:
        identity, _, _ = conv_bn(x, N, H, W, blk["downsample"], 1, stride, 0, relu=False)
    else:
        identity = x
    # residual add (bf16, upcast in-kernel) + ReLU fused into the conv3 matmul epilogue
    out, H3, W3 = conv_bn(out, N, H2, W2, blk["conv3"], 1, 1, 0,
                          relu=True, residual=identity)
    return out, H3, W3


@jax.jit
def resnet50_forward(x, params):
    # x: NCHW (PyTorch convention) -> flattened NHWC, bf16 end-to-end
    N, C, H, W = x.shape
    h = jnp.transpose(x, (0, 2, 3, 1)).reshape(N * H * W, C).astype(jnp.bfloat16)
    # stem: conv 7x7/2 + BN + ReLU, maxpool 3x3/2
    h, H, W = conv_bn(h, N, H, W, params["stem"], 7, 2, 3, relu=True)
    h, H, W = maxpool3x3s2(h, N, H, W)
    # layers 1..4
    for li, (_planes, nblocks, stride0) in enumerate(LAYER_CFG):
        for bi in range(nblocks):
            s = stride0 if bi == 0 else 1
            h, H, W = _bottleneck(h, N, H, W, params["layers"][li][bi], s)
    # adaptive avg pool (1,1) + flatten (tiny, plain JAX, f32 reduction)
    Cf = h.shape[1]
    feat = h.reshape(N, H * W, Cf).astype(jnp.float32).mean(axis=1)
    # replaced fc (f32 output)
    return matmul_bias_act(feat, params["fc"][0], params["fc"][1], relu=False,
                           out_dtype=jnp.float32)


if __name__ == "__main__":
    # --- matmul kernel sanity checks (bf16 MXU operands, f32 accumulate) ---
    a = jax.random.normal(jax.random.PRNGKey(1), (16, 20), jnp.float32)
    w = jax.random.normal(jax.random.PRNGKey(2), (20, 40), jnp.float32)
    b = jax.random.normal(jax.random.PRNGKey(3), (40,), jnp.float32)
    r = jax.random.normal(jax.random.PRNGKey(4), (16, 40), jnp.float32)
    ref_mm = jnp.dot(a.astype(jnp.bfloat16), w.astype(jnp.bfloat16),
                     preferred_element_type=jnp.float32) + b
    got = matmul_bias_act(a, w, b, relu=True)
    np.testing.assert_allclose(np.asarray(got), np.asarray(jnp.maximum(ref_mm, 0.0)),
                               rtol=1e-2, atol=1e-2)
    got_res = matmul_bias_act(a, w, b, relu=True, residual=r)
    np.testing.assert_allclose(np.asarray(got_res),
                               np.asarray(jnp.maximum(ref_mm + r, 0.0)),
                               rtol=1e-2, atol=1e-2)

    # --- direct 3x3 conv kernel vs lax.conv (stride 1 and 2) ---
    xc = jax.random.normal(jax.random.PRNGKey(6), (2, 9, 10, 16), jnp.float32).astype(jnp.bfloat16)
    wc = (0.1 * jax.random.normal(jax.random.PRNGKey(7), (3, 3, 16, 32), jnp.float32)
          ).astype(jnp.bfloat16)
    bc = 0.1 * jax.random.normal(jax.random.PRNGKey(8), (32,), jnp.float32)
    for s in (1, 2):
        got_c, ohc, owc = conv_direct(xc.reshape(2 * 9 * 10, 16), 2, 9, 10, wc, bc,
                                      3, s, 1, relu=False, out_dtype=jnp.float32)
        ref_c = jax.lax.conv_general_dilated(
            xc.astype(jnp.float32), wc.astype(jnp.float32), (s, s), [(1, 1), (1, 1)],
            dimension_numbers=("NHWC", "HWIO", "NHWC"),
            precision=jax.lax.Precision.HIGHEST) + bc
        np.testing.assert_allclose(np.asarray(got_c).reshape(2, ohc, owc, 32),
                                   np.asarray(ref_c), rtol=1e-2, atol=1e-2)

    # --- maxpool kernel sanity check vs lax.reduce_window ---
    xm = jax.random.normal(jax.random.PRNGKey(5), (2, 9, 10, 64), jnp.float32)
    got_mp, OHm, OWm = maxpool3x3s2(xm.reshape(2 * 9 * 10, 64), 2, 9, 10)
    ref_mp = jax.lax.reduce_window(xm, -jnp.inf, jax.lax.max,
                                   (1, 3, 3, 1), (1, 2, 2, 1),
                                   [(0, 0), (1, 1), (1, 1), (0, 0)])
    np.testing.assert_allclose(np.asarray(got_mp.reshape(2, OHm, OWm, 64)),
                               np.asarray(ref_mp), rtol=1e-6, atol=1e-6)

    # --- full forward ---
    key = jax.random.PRNGKey(0)
    kp, kx = jax.random.split(key)
    out_features = 128
    params = init_params(kp, out_features)
    x = jax.random.normal(kx, (2, 3, 32, 32), jnp.float32)   # NCHW, small spatial

    out = resnet50_forward(x, params)
    out = jax.block_until_ready(out)

    assert out.shape == (2, out_features), out.shape
    assert bool(jnp.all(jnp.isfinite(out)))
    print("KERNEL_OK")
</pallas_src>

<mosaic_0001>
module attributes {stable_mosaic.version = 11 : i64} {
  func.func @_mm_kernel(%arg0: i32, %arg1: i32, %arg2: i32, %arg3: memref<16x20xbf16, #tpu.memory_space<vmem>>, %arg4: memref<20x40xbf16, #tpu.memory_space<vmem>>, %arg5: memref<1x40xf32, #tpu.memory_space<vmem>>, %arg6: memref<16x40xf32, #tpu.memory_space<vmem>>, %arg7: memref<16x40xf32, #tpu.memory_space<vmem>>) attributes {dimension_semantics = [#tpu.dimension_semantics<parallel>, #tpu.dimension_semantics<parallel>, #tpu.dimension_semantics<arbitrary>], iteration_bounds = array<i64: 1, 1, 1>, scalar_prefetch = 0 : i64, scratch_operands = 1 : i64, tpu.core_type = #tpu.core_type<tc>, window_params = [{transform_indices = @transform_0, window_bounds = array<i64: 16, 20>}, {transform_indices = @transform_1, window_bounds = array<i64: 20, 40>}, {transform_indices = @transform_2, window_bounds = array<i64: 1, 40>}, {transform_indices = @transform_3, window_bounds = array<i64: 16, 40>}]} {
    %c0_i32 = arith.constant 0 : i32
    %0 = arith.cmpi eq, %arg2, %c0_i32 : i32
    %1 = arith.extui %0 : i1 to i32
    %c0_i32_0 = arith.constant 0 : i32
    %2 = arith.cmpi ne, %1, %c0_i32_0 : i32
    scf.if %2 {
      %cst_10 = arith.constant 0.000000e+00 : f32
      %12 = vector.broadcast %cst_10 : f32 to vector<16x40xf32>
      %c0_11 = arith.constant 0 : index
      %c0_12 = arith.constant 0 : index
      %13 = vector.load %arg7[%c0_11, %c0_12] : memref<16x40xf32, #tpu.memory_space<vmem>>, vector<16x40xf32>
      tpu.vector_store %arg7[%c0_11, %c0_12], %12 {strides = array<i32>} : memref<16x40xf32, #tpu.memory_space<vmem>>, vector<16x40xf32>,
    } else {
    }
    %c0 = arith.constant 0 : index
    %c0_1 = arith.constant 0 : index
    %3 = vector.load %arg7[%c0, %c0_1] : memref<16x40xf32, #tpu.memory_space<vmem>>, vector<16x40xf32>
    %c0_2 = arith.constant 0 : index
    %c0_3 = arith.constant 0 : index
    %4 = vector.load %arg3[%c0_2, %c0_3] : memref<16x20xbf16, #tpu.memory_space<vmem>>, vector<16x20xbf16>
    %c0_4 = arith.constant 0 : index
    %c0_5 = arith.constant 0 : index
    %5 = vector.load %arg4[%c0_4, %c0_5] : memref<20x40xbf16, #tpu.memory_space<vmem>>, vector<20x40xbf16>
    %cst = arith.constant dense<0.000000e+00> : vector<16x40xf32>
    %6 = tpu.matmul %4, %5, %cst {dimension_numbers = #tpu.dot_dimension_numbers<[1], [0], [0], [1], [0, 0, 1, 1], [], []>} : vector<16x20xbf16>, vector<20x40xbf16>, vector<16x40xf32> -> vector<16x40xf32>
    %7 = arith.addf %3, %6 : vector<16x40xf32>
    %c0_6 = arith.constant 0 : index
    %c0_7 = arith.constant 0 : index
    %8 = vector.load %arg7[%c0_6, %c0_7] : memref<16x40xf32, #tpu.memory_space<vmem>>, vector<16x40xf32>
    tpu.vector_store %arg7[%c0_6, %c0_7], %7 {strides = array<i32>} : memref<16x40xf32, #tpu.memory_space<vmem>>, vector<16x40xf32>,
    %c0_i32_8 = arith.constant 0 : i32
    %9 = arith.cmpi eq, %arg2, %c0_i32_8 : i32
    %10 = arith.extui %9 : i1 to i32
    %c0_i32_9 = arith.constant 0 : i32
    %11 = arith.cmpi ne, %10, %c0_i32_9 : i32
    scf.if %11 {
      %c0_10 = arith.constant 0 : index
      %c0_11 = arith.constant 0 : index
      %12 = vector.load %arg7[%c0_10, %c0_11] : memref<16x40xf32, #tpu.memory_space<vmem>>, vector<16x40xf32>
      %c0_12 = arith.constant 0 : index
      %c0_13 = arith.constant 0 : index
      %13 = vector.load %arg5[%c0_12, %c0_13] : memref<1x40xf32, #tpu.memory_space<vmem>>, vector<1x40xf32>
      %14 = vector.broadcast %13 : vector<1x40xf32> to vector<16x40xf32>
      %15 = arith.addf %12, %14 : vector<16x40xf32>
      %cst_14 = arith.constant 0.000000e+00 : f32
      %16 = vector.broadcast %cst_14 : f32 to vector<16x40xf32>
      %17 = arith.maximumf %15, %16 : vector<16x40xf32>
      %c0_15 = arith.constant 0 : index
      %c0_16 = arith.constant 0 : index
      %18 = vector.load %arg6[%c0_15, %c0_16] : memref<16x40xf32, #tpu.memory_space<vmem>>, vector<16x40xf32>
      tpu.vector_store %arg6[%c0_15, %c0_16], %17 {strides = array<i32>} : memref<16x40xf32, #tpu.memory_space<vmem>>, vector<16x40xf32>,
    } else {
    }
    return
  }
  func.func @transform_0(%arg0: i32, %arg1: i32, %arg2: i32) -> (i32, i32) {
    %c0_i32 = arith.constant 0 : i32
    return %arg0, %arg2 : i32, i32
  }
  func.func @transform_1(%arg0: i32, %arg1: i32, %arg2: i32) -> (i32, i32) {
    %c0_i32 = arith.constant 0 : i32
    return %arg2, %arg1 : i32, i32
  }
  func.func @transform_2(%arg0: i32, %arg1: i32, %arg2: i32) -> (i32, i32) {
    %c0_i32 = arith.constant 0 : i32
    %c0_i32_0 = arith.constant 0 : i32
    return %c0_i32, %arg1 : i32, i32
  }
  func.func @transform_3(%arg0: i32, %arg1: i32, %arg2: i32) -> (i32, i32) {
    %c0_i32 = arith.constant 0 : i32
    return %arg0, %arg1 : i32, i32
  }
}

</mosaic_0001>

<llo_original>
// kernel: tpu_custom_call.1
$region0: #{tpu_custom_call.1}
  #allocation0 [shape = 'u32[]', space=smem, size = 0x4, offset = 0x4, fixed_abs, tag = 'smem constant byte address 0x4 - core index']
  #allocation1 [shape = 'u32[72,128]{1,0:T(1,128)}', space=vmem, size = 0x9000, scoped, tag = 'internal scratch']
  #allocation2 [shape = 'f32[16,40]{1,0:T(8,128)}', space=vmem, size = 0x2000, scoped, tag = 'scratch operand']
  %s0 = inlined_call_operand.hbm [shape: bf16[16,20], index: 0, kind: input, shape index: {}]
  %s1 = inlined_call_operand.hbm [shape: bf16[20,40], index: 1, kind: input, shape index: {}]
  %s2 = inlined_call_operand.vmem [shape: f32[1,40], index: 2, kind: input, shape index: {}]
  %s3 = inlined_call_operand.hbm [shape: f32[16,40], index: 3, kind: output, shape index: {}]
  %s4 = sld [smem:[#allocation0]]
  $region38: #{tpu_custom_call.1} parent=0
    _
  %s6 = ssub.s32 1, %s4
  %s7 = scalar_select 0, %s6, %s4
  $region1: #{tpu_custom_call.1} parent=0
    #allocation3 [shape = 'u8[4096]{0}', space=vmem, size = 0x1000, scoped, tag = 'input window, operand 0, single buffered']
    #allocation4 [shape = 's32[1]{0}', space=sflag, size = 0x4, scoped, tag = 'scoped memory for tpu_custom_call.1']
    #allocation5 [shape = 's32[1]{0}', space=sflag, size = 0x4, scoped, tag = 'scoped memory for tpu_custom_call.1']
    #allocation6 [shape = 'u8[6144]{0}', space=vmem, size = 0x1800, scoped, tag = 'input window, operand 1, single buffered']
    #allocation7 [shape = 's32[1]{0}', space=sflag, size = 0x4, scoped, tag = 'scoped memory for tpu_custom_call.1']
    #allocation8 [shape = 'u8[8192]{0}', space=vmem, size = 0x2000, scoped, tag = 'output window, operand 0, single buffered']
    %8 = vsyncpa [#allocation4], 0
    %9 = vsyncpa [#allocation7], 0
    %10 = vsyncpa [#allocation5], 0
    // Predicated region
    $region2: #{tpu_custom_call.1} parent=1 // pred_check
      _
    $region3: #{tpu_custom_call.1} parent=1 // pred_check_branch
      %12 = sbr.rel (0) target = $region5
    $region4: #{tpu_custom_call.1} parent=1 // pred_region
      %14 = vsyncadd [#allocation4], 0
      %s15 = sshll.u32 %s0, 4
      %s16 = int_to_ptr.hbm [resolvable:$true] %s15
      %s17 = sshll.u32 [#allocation3], 4
      %s18 = int_to_ptr.vmem [resolvable:$true] %s17
      %23 = dma.hbm_to_vmem [thread:$0]  %s16, 128, %s18, [#allocation4], 64, 64, 4
    $region5: #{tpu_custom_call.1} parent=1 // pred_fallthru
      _
    // Predicated region
    $region6: #{tpu_custom_call.1} parent=1 // pred_check
      _
    $region7: #{tpu_custom_call.1} parent=1 // pred_check_branch
      %25 = sbr.rel (0) target = $region9
    $region8: #{tpu_custom_call.1} parent=1 // pred_region
      %27 = vsyncadd [#allocation7], 0
      %s28 = sshll.u32 %s1, 4
      %s29 = int_to_ptr.hbm [resolvable:$true] %s28
      %s30 = sshll.u32 [#allocation6], 4
      %s31 = int_to_ptr.vmem [resolvable:$true] %s30
      %36 = dma.hbm_to_vmem [thread:$0]  %s29, 192, %s31, [#allocation7], 64, 64, 4
    $region9: #{tpu_custom_call.1} parent=1 // pred_fallthru
      _
    // Predicated region
    $region10: #{tpu_custom_call.1} parent=1 // pred_check
      _
    $region11: #{tpu_custom_call.1} parent=1 // pred_check_branch
      %38 = sbr.rel (0) target = $region13
    $region12: #{tpu_custom_call.1} parent=1 // pred_region
      _
    $region13: #{tpu_custom_call.1} parent=1 // pred_fallthru
      _
    // Predicated region
    $region14: #{tpu_custom_call.1} parent=1 // pred_check
      _
    $region15: #{tpu_custom_call.1} parent=1 // pred_check_branch
      %40 = sbr.rel (0) target = $region17
    $region16: #{tpu_custom_call.1} parent=1 // pred_region
      %42 = dma.done [#allocation4], 128
    $region17: #{tpu_custom_call.1} parent=1 // pred_fallthru
      _
    // Predicated region
    $region18: #{tpu_custom_call.1} parent=1 // pred_check
      _
    $region19: #{tpu_custom_call.1} parent=1 // pred_check_branch
      %44 = sbr.rel (0) target = $region21
    $region20: #{tpu_custom_call.1} parent=1 // pred_region
      %46 = dma.done [#allocation7], 192
    $region21: #{tpu_custom_call.1} parent=1 // pred_fallthru
      _
    %p48 = scmp.eq.s32.totalorder 0, 0
    // Predicated region
    $region22: #{tpu_custom_call.1} parent=1 // pred_check
      %p49 = pneg %p48
    $region23: #{tpu_custom_call.1} parent=1 // pred_check_branch
      %51 = sbr.rel (%p49) target = $region25
    $region24: #{tpu_custom_call.1} parent=1 // pred_region
      %vm52 = vcmask 326656
      %53 = vst.msk [vmem:[#allocation2] sm:$0xff] %vm52, 0.0
      %54 = vst.msk [vmem:[#allocation2 + $0x8] sm:$0xff] %vm52, 0.0
    $region25: #{tpu_custom_call.1} parent=1 // pred_fallthru
      _
    %v55 = vld [vmem:[#allocation2] sm:$0xff]
    %v56 = vld [vmem:[#allocation2 + $0x8] sm:$0xff]
    %v57 = vld [vmem:[#allocation3] sm:$0xf]
    %v58 = vld [vmem:[#allocation3 + $0x4] sm:$0xf]
    %v59 = vld [vmem:[#allocation6] sm:$0xf]
    %v60 = vld [vmem:[#allocation6 + $0x4] sm:$0xf]
    %v61 = vld [vmem:[#allocation6 + $0x8] sm:$0x3]
    %v64 = vunpack.c.l.b16 %v57
    %v65 = vunpack.c.l.b16 %v58
    %v66 = vpack.c.b16 %v65, %v64
    %v70 = vunpack.c.l.b16 %v59
    %v71 = vunpack.c.l.b16 %v60
    %v72 = vunpack.c.l.b16 %v61
    %v73 = vpack.c.b16 %v71, %v70
    %v74 = vpack.c.b16 %v72, %v72
    %vm76 = vcmask 162816
    %v78 = vsel %vm76, %v66, 0
    %vm80 = vcmask 1041408
    %v82 = vsel %vm80, %v74, 0
    %84 = vmatpush.bf16.msra.mxu0 0
    %85 = vmatpush.bf16.msra.mxu0 0
    %86 = vmatpush.bf16.msra.mxu0 0
    %87 = vmatpush.bf16.msra.mxu0 0
    %88 = vmatpush.bf16.msra.mxu0 0
    %89 = vmatpush.bf16.msra.mxu0 0
    %90 = vmatpush.bf16.msra.mxu0 %v82
    %91 = vmatpush.bf16.msra.mxu0 %v73
    %92 = vmatmul.bf16.gmra.mxu0 %v78
    %v93 = vpop.f32.mrf.mxu0
    %v94 = vadd.f32 0.0, %v93
    %v95 = vpop.f32.mrf.mxu0
    %v96 = vadd.f32 0.0, %v95
    %97 = vdwg.mxu0
    %v98 = vadd.f32 %v55, %v94
    %v99 = vadd.f32 %v56, %v96
    %vm100 = vcmask 326656
    %101 = vst.msk [vmem:[#allocation2] sm:$0xff] %vm100, %v98
    %102 = vst.msk [vmem:[#allocation2 + $0x8] sm:$0xff] %vm100, %v99
    // Predicated region
    $region26: #{tpu_custom_call.1} parent=1 // pred_check
      %p103 = pneg %p48
    $region27: #{tpu_custom_call.1} parent=1 // pred_check_branch
      %105 = sbr.rel (%p103) target = $region29
    $region28: #{tpu_custom_call.1} parent=1 // pred_region
      %v106 = vld [vmem:[#allocation2] sm:$0xff]
      %v107 = vld [vmem:[#allocation2 + $0x8] sm:$0xff]
      %v108 = vld [vmem:[%s2] sm:$0x1]
      %v110 = vperm.slane %v108, 0
      %v112 = vadd.f32 %v106, %v110
      %v113 = vadd.f32 %v107, %v110
      %v114 = vmax.f32 %v112, 0.0
      %v115 = vmax.f32 %v113, 0.0
      %116 = vst.msk [vmem:[#allocation8] sm:$0xff] %vm100, %v114
      %117 = vst.msk [vmem:[#allocation8 + $0x8] sm:$0xff] %vm100, %v115
    $region29: #{tpu_custom_call.1} parent=1 // pred_fallthru
      _
    // Predicated region
    $region30: #{tpu_custom_call.1} parent=1 // pred_check
      _
    $region31: #{tpu_custom_call.1} parent=1 // pred_check_branch
      %119 = sbr.rel (0) target = $region33
    $region32: #{tpu_custom_call.1} parent=1 // pred_region
      %121 = vsyncadd [#allocation5], 0
      %s122 = sshll.u32 [#allocation8], 4
      %s123 = int_to_ptr.vmem [resolvable:$true] %s122
      %s124 = sshll.u32 %s3, 4
      %s125 = int_to_ptr.hbm [resolvable:$true] %s124
      %130 = dma.vmem_to_hbm [thread:$0]  %s123, 256, %s125, [#allocation5], 128, 128, 8
    $region33: #{tpu_custom_call.1} parent=1 // pred_fallthru
      _
    // Predicated region
    $region34: #{tpu_custom_call.1} parent=1 // pred_check
      _
    $region35: #{tpu_custom_call.1} parent=1 // pred_check_branch
      %132 = sbr.rel (0) target = $region37
    $region36: #{tpu_custom_call.1} parent=1 // pred_region
      %134 = dma.done [#allocation5], 256
    $region37: #{tpu_custom_call.1} parent=1 // pred_fallthru
      _
    %135 = vsyncpa [#allocation4], 1
    %136 = vsyncpa [#allocation7], 1
    %137 = vsyncpa [#allocation5], 1

</llo_original>
